<compile_context>
chip_gen: v7x
topology: tpu7x:2x2x1
jax: 0.10.0
libtpu: 0.0.40
codegen_flags: <defaults>
</compile_context>

<pallas_src>
import jax
import jax.numpy as jnp
from jax.experimental import pallas as pl
from jax.experimental.pallas import tpu as pltpu

_SUBLANE = 8


def _round_up(n, m):
    return ((n + m - 1) // m) * m


def _pick_batch_tile(B, D, H1, H2, *, tb_max=2048, vmem_budget_bytes=10 * 1024 * 1024):
    """Pick the batch tile from a VMEM budget (safe under the 16 MiB v5e scoped default)."""
    # Per-batch-row VMEM bytes:
    #   double-buffered x tile (<= f32): 2 * D * 4
    #   bf16 x/h1 copies + f32 h1/h2 intermediates: D*2 + H1*2 + (H1 + H2)*4
    #   double-buffered lane-dense f32 output row: 2 * 4
    per_row = 2 * D * 4 + D * 2 + H1 * 2 + (H1 + H2) * 4 + 2 * 4
    tb = min(tb_max, max(_SUBLANE, vmem_budget_bytes // per_row))
    # Shrink for small batches (don't burn MXU work on padded garbage rows).
    tb = min(tb, _round_up(B, _SUBLANE))
    # v7x megacore: expose at least 2 parallel grid steps when there is enough work.
    if B >= 1024:
        tb = min(tb, _round_up(pl.cdiv(B, 2), _SUBLANE))
    return _round_up(tb, _SUBLANE)


def _disc_kernel(x_ref, w1_ref, b1_ref, w2_ref, b2_ref, w3t_ref, b3_ref, o_ref):
    tb = x_ref.shape[0]
    # Layers 1-2: bf16 inputs on the MXU, f32 accumulation; bias + ReLU in f32 (VPU).
    x = x_ref[...].astype(jnp.bfloat16)                                   # (TB, D)
    h1 = jnp.dot(x, w1_ref[...], preferred_element_type=jnp.float32)      # (TB, 256)
    h1 = jnp.maximum(h1 + b1_ref[...], 0.0)
    h2 = jnp.dot(h1.astype(jnp.bfloat16), w2_ref[...],
                 preferred_element_type=jnp.float32)                      # (TB, 128)
    h2 = jnp.maximum(h2 + b2_ref[...], 0.0)
    # Layer 3 (single output column): VPU multiply + XLU lane reduce instead of an
    # N=1 MXU matmul (which would waste an entire MXU weight push).
    z = jnp.sum(h2 * w3t_ref[...], axis=-1, keepdims=True) + b3_ref[...]  # (TB, 1)
    probs = jax.nn.sigmoid(z)                                             # EUP epilogue
    # Lane-dense store: relayout (TB,1) -> (1,1,TB) so the output row is written with
    # full-width stores / a dense writeback instead of lane-width-1 masked stores.
    o_ref[...] = probs.reshape(1, 1, tb)


def discriminator_forward(x, params, *, tb_max=2048):
    """x: (B, input_dim) float32 or bfloat16. params: dict of w1,b1,w2,b2,w3,b3."""
    B, D = x.shape
    w1, b1 = params["w1"], params["b1"]   # (D,256), (1,256)
    w2, b2 = params["w2"], params["b2"]   # (256,128), (1,128)
    w3, b3 = params["w3"], params["b3"]   # (128,1), (1,1)
    H1, H2, H3 = w1.shape[1], w2.shape[1], w3.shape[1]

    tb = _pick_batch_tile(B, D, H1, H2, tb_max=tb_max)
    Bp = _round_up(B, tb)
    if Bp != B:
        x = jnp.pad(x, ((0, Bp - B), (0, 0)))
    num_tiles = Bp // tb

    # Matmul weights in bf16 (MXU-native on all generations); biases and the
    # layer-3 row (VPU path) stay f32.
    w1b = w1.astype(jnp.bfloat16)
    w2b = w2.astype(jnp.bfloat16)
    w3t = jnp.transpose(w3)               # (1, H2)

    out = pl.pallas_call(
        _disc_kernel,
        # Lane-dense output: batch on the lane axis, one (1,1,tb) row per grid step.
        out_shape=jax.ShapeDtypeStruct((num_tiles, 1, tb), jnp.float32),
        grid_spec=pltpu.PrefetchScalarGridSpec(
            num_scalar_prefetch=0,
            grid=(num_tiles,),
            in_specs=[
                pl.BlockSpec((tb, D), lambda i: (i, 0)),       # x tile over batch
                pl.BlockSpec((D, H1), lambda i: (0, 0)),       # w1 (resident, bf16)
                pl.BlockSpec((1, H1), lambda i: (0, 0)),       # b1
                pl.BlockSpec((H1, H2), lambda i: (0, 0)),      # w2 (resident, bf16)
                pl.BlockSpec((1, H2), lambda i: (0, 0)),       # b2
                pl.BlockSpec((1, H2), lambda i: (0, 0)),       # w3^T row (f32)
                pl.BlockSpec((1, H3), lambda i: (0, 0)),       # b3
            ],
            out_specs=pl.BlockSpec((1, 1, tb), lambda i: (i, 0, 0)),
        ),
        compiler_params=pltpu.CompilerParams(
            dimension_semantics=("parallel",)),
    )(x, w1b, b1, w2b, b2, w3t, b3)
    return out.reshape(Bp, 1)[:B]


def init_params(key, input_dim):
    """Deterministic synthetic init (PyTorch-like uniform ranges)."""
    ks = jax.random.split(key, 6)

    def lin(kw, kb, fan_in, fan_out):
        bound = 1.0 / jnp.sqrt(fan_in)
        w = jax.random.uniform(kw, (fan_in, fan_out), jnp.float32, -bound, bound)
        b = jax.random.uniform(kb, (1, fan_out), jnp.float32, -bound, bound)
        return w, b

    w1, b1 = lin(ks[0], ks[1], input_dim, 256)
    w2, b2 = lin(ks[2], ks[3], 256, 128)
    w3, b3 = lin(ks[4], ks[5], 128, 1)
    return {"w1": w1, "b1": b1, "w2": w2, "b2": b2, "w3": w3, "b3": b3}


def _reference_forward_f32(x, p):
    h1 = jnp.maximum(x @ p["w1"] + p["b1"], 0.0)
    h2 = jnp.maximum(h1 @ p["w2"] + p["b2"], 0.0)
    return jax.nn.sigmoid(h2 @ p["w3"] + p["b3"])


def _reference_forward_bf16(x, p):
    # Mimics the kernel's numerics (bf16 MXU inputs, f32 accumulation/epilogue).
    bf = jnp.bfloat16
    h1 = jnp.maximum(
        jnp.dot(x.astype(bf), p["w1"].astype(bf),
                preferred_element_type=jnp.float32) + p["b1"], 0.0)
    h2 = jnp.maximum(
        jnp.dot(h1.astype(bf), p["w2"].astype(bf),
                preferred_element_type=jnp.float32) + p["b2"], 0.0)
    return jax.nn.sigmoid(h2 @ p["w3"] + p["b3"])


if __name__ == "__main__":
    key = jax.random.PRNGKey(0)
    k_x, k_p = jax.random.split(key)

    input_dim = 32
    params = init_params(k_p, input_dim)

    # batch=16 exercises the exact-fit single-tile path; batch=50 exercises padding
    # (not a multiple of 8); batch=1200 exercises the multi-tile / megacore-split path.
    for batch in (16, 50, 1200):
        x = jax.random.normal(jax.random.fold_in(k_x, batch),
                              (batch, input_dim), jnp.float32)
        out = jax.block_until_ready(discriminator_forward(x, params))
        assert out.shape == (batch, 1), out.shape

        ref_bf16 = _reference_forward_bf16(x, params)
        ref_f32 = _reference_forward_f32(x, params)
        assert jnp.allclose(out, ref_bf16, atol=1e-3, rtol=1e-3), \
            "mismatch vs bf16-matched reference"
        assert jnp.allclose(out, ref_f32, atol=5e-2), \
            "mismatch vs f32 reference"

    print("KERNEL_OK")
</pallas_src>

<mosaic_0001>
module attributes {stable_mosaic.version = 11 : i64} {
  func.func @_disc_kernel(%arg0: i32, %arg1: memref<16x32xf32, #tpu.memory_space<vmem>>, %arg2: memref<32x256xbf16, #tpu.memory_space<vmem>>, %arg3: memref<1x256xf32, #tpu.memory_space<vmem>>, %arg4: memref<256x128xbf16, #tpu.memory_space<vmem>>, %arg5: memref<1x128xf32, #tpu.memory_space<vmem>>, %arg6: memref<1x128xf32, #tpu.memory_space<vmem>>, %arg7: memref<1x1xf32, #tpu.memory_space<vmem>>, %arg8: memref<1x1x16xf32, #tpu.memory_space<vmem>>) attributes {dimension_semantics = [#tpu.dimension_semantics<parallel>], iteration_bounds = array<i64: 1>, scalar_prefetch = 0 : i64, scratch_operands = 0 : i64, tpu.core_type = #tpu.core_type<tc>, window_params = [{transform_indices = @transform_0, window_bounds = array<i64: 16, 32>}, {pipeline_mode = #tpu.pipeline_mode<synchronous>, transform_indices = @transform_1, window_bounds = array<i64: 32, 256>}, {pipeline_mode = #tpu.pipeline_mode<synchronous>, transform_indices = @transform_2, window_bounds = array<i64: 1, 256>}, {pipeline_mode = #tpu.pipeline_mode<synchronous>, transform_indices = @transform_3, window_bounds = array<i64: 256, 128>}, {pipeline_mode = #tpu.pipeline_mode<synchronous>, transform_indices = @transform_4, window_bounds = array<i64: 1, 128>}, {pipeline_mode = #tpu.pipeline_mode<synchronous>, transform_indices = @transform_5, window_bounds = array<i64: 1, 128>}, {pipeline_mode = #tpu.pipeline_mode<synchronous>, transform_indices = @transform_6, window_bounds = array<i64: 1, 1>}, {transform_indices = @transform_7, window_bounds = array<i64: 1, 1, 16>}]} {
    %c0 = arith.constant 0 : index
    %c0_0 = arith.constant 0 : index
    %0 = vector.load %arg1[%c0, %c0_0] : memref<16x32xf32, #tpu.memory_space<vmem>>, vector<16x32xf32>
    %1 = arith.truncf %0 : vector<16x32xf32> to vector<16x32xbf16>
    %c0_1 = arith.constant 0 : index
    %c0_2 = arith.constant 0 : index
    %2 = vector.load %arg2[%c0_1, %c0_2] : memref<32x256xbf16, #tpu.memory_space<vmem>>, vector<32x256xbf16>
    %cst = arith.constant dense<0.000000e+00> : vector<16x256xf32>
    %3 = tpu.matmul %1, %2, %cst {dimension_numbers = #tpu.dot_dimension_numbers<[1], [0], [0], [1], [0, 0, 1, 1], [], []>} : vector<16x32xbf16>, vector<32x256xbf16>, vector<16x256xf32> -> vector<16x256xf32>
    %c0_3 = arith.constant 0 : index
    %c0_4 = arith.constant 0 : index
    %4 = vector.load %arg3[%c0_3, %c0_4] : memref<1x256xf32, #tpu.memory_space<vmem>>, vector<1x256xf32>
    %5 = vector.broadcast %4 : vector<1x256xf32> to vector<16x256xf32>
    %6 = arith.addf %3, %5 : vector<16x256xf32>
    %cst_5 = arith.constant 0.000000e+00 : f32
    %7 = vector.broadcast %cst_5 : f32 to vector<16x256xf32>
    %8 = arith.maximumf %6, %7 : vector<16x256xf32>
    %9 = arith.truncf %8 : vector<16x256xf32> to vector<16x256xbf16>
    %c0_6 = arith.constant 0 : index
    %c0_7 = arith.constant 0 : index
    %10 = vector.load %arg4[%c0_6, %c0_7] : memref<256x128xbf16, #tpu.memory_space<vmem>>, vector<256x128xbf16>
    %cst_8 = arith.constant dense<0.000000e+00> : vector<16x128xf32>
    %11 = tpu.matmul %9, %10, %cst_8 {dimension_numbers = #tpu.dot_dimension_numbers<[1], [0], [0], [1], [0, 0, 1, 1], [], []>} : vector<16x256xbf16>, vector<256x128xbf16>, vector<16x128xf32> -> vector<16x128xf32>
    %c0_9 = arith.constant 0 : index
    %c0_10 = arith.constant 0 : index
    %12 = vector.load %arg5[%c0_9, %c0_10] : memref<1x128xf32, #tpu.memory_space<vmem>>, vector<1x128xf32>
    %13 = vector.broadcast %12 : vector<1x128xf32> to vector<16x128xf32>
    %14 = arith.addf %11, %13 : vector<16x128xf32>
    %cst_11 = arith.constant 0.000000e+00 : f32
    %15 = vector.broadcast %cst_11 : f32 to vector<16x128xf32>
    %16 = arith.maximumf %14, %15 : vector<16x128xf32>
    %c0_12 = arith.constant 0 : index
    %c0_13 = arith.constant 0 : index
    %17 = vector.load %arg6[%c0_12, %c0_13] : memref<1x128xf32, #tpu.memory_space<vmem>>, vector<1x128xf32>
    %18 = vector.broadcast %17 : vector<1x128xf32> to vector<16x128xf32>
    %19 = arith.mulf %16, %18 : vector<16x128xf32>
    %cst_14 = arith.constant dense<0.000000e+00> : vector<16xf32>
    %20 = vector.multi_reduction <add>, %19, %cst_14 [1] : vector<16x128xf32> to vector<16xf32>
    %21 = vector.shape_cast %20 : vector<16xf32> to vector<16x1xf32>
    %c0_15 = arith.constant 0 : index
    %c0_16 = arith.constant 0 : index
    %22 = vector.load %arg7[%c0_15, %c0_16] : memref<1x1xf32, #tpu.memory_space<vmem>>, vector<1x1xf32>
    %23 = vector.broadcast %22 : vector<1x1xf32> to vector<16x1xf32>
    %24 = arith.addf %21, %23 : vector<16x1xf32>
    %25 = arith.negf %24 : vector<16x1xf32>
    %26 = math.exp %25 : vector<16x1xf32>
    %cst_17 = arith.constant 1.000000e+00 : f32
    %27 = vector.broadcast %cst_17 : f32 to vector<16x1xf32>
    %28 = arith.addf %27, %26 : vector<16x1xf32>
    %29 = arith.divf %27, %28 : vector<16x1xf32>
    %30 = vector.shape_cast %29 : vector<16x1xf32> to vector<1x1x16xf32>
    %c0_18 = arith.constant 0 : index
    %c0_19 = arith.constant 0 : index
    %c0_20 = arith.constant 0 : index
    %31 = vector.load %arg8[%c0_18, %c0_19, %c0_20] : memref<1x1x16xf32, #tpu.memory_space<vmem>>, vector<1x1x16xf32>
    tpu.vector_store %arg8[%c0_18, %c0_19, %c0_20], %30 {strides = array<i32>} : memref<1x1x16xf32, #tpu.memory_space<vmem>>, vector<1x1x16xf32>,
    return
  }
  func.func @transform_0(%arg0: i32) -> (i32, i32) {
    %c0_i32 = arith.constant 0 : i32
    %c0_i32_0 = arith.constant 0 : i32
    return %arg0, %c0_i32 : i32, i32
  }
  func.func @transform_1(%arg0: i32) -> (i32, i32) {
    %c0_i32 = arith.constant 0 : i32
    %c0_i32_0 = arith.constant 0 : i32
    %c0_i32_1 = arith.constant 0 : i32
    return %c0_i32, %c0_i32_0 : i32, i32
  }
  func.func @transform_2(%arg0: i32) -> (i32, i32) {
    %c0_i32 = arith.constant 0 : i32
    %c0_i32_0 = arith.constant 0 : i32
    %c0_i32_1 = arith.constant 0 : i32
    return %c0_i32, %c0_i32_0 : i32, i32
  }
  func.func @transform_3(%arg0: i32) -> (i32, i32) {
    %c0_i32 = arith.constant 0 : i32
    %c0_i32_0 = arith.constant 0 : i32
    %c0_i32_1 = arith.constant 0 : i32
    return %c0_i32, %c0_i32_0 : i32, i32
  }
  func.func @transform_4(%arg0: i32) -> (i32, i32) {
    %c0_i32 = arith.constant 0 : i32
    %c0_i32_0 = arith.constant 0 : i32
    %c0_i32_1 = arith.constant 0 : i32
    return %c0_i32, %c0_i32_0 : i32, i32
  }
  func.func @transform_5(%arg0: i32) -> (i32, i32) {
    %c0_i32 = arith.constant 0 : i32
    %c0_i32_0 = arith.constant 0 : i32
    %c0_i32_1 = arith.constant 0 : i32
    return %c0_i32, %c0_i32_0 : i32, i32
  }
  func.func @transform_6(%arg0: i32) -> (i32, i32) {
    %c0_i32 = arith.constant 0 : i32
    %c0_i32_0 = arith.constant 0 : i32
    %c0_i32_1 = arith.constant 0 : i32
    return %c0_i32, %c0_i32_0 : i32, i32
  }
  func.func @transform_7(%arg0: i32) -> (i32, i32, i32) {
    %c0_i32 = arith.constant 0 : i32
    %c0_i32_0 = arith.constant 0 : i32
    %c0_i32_1 = arith.constant 0 : i32
    return %arg0, %c0_i32, %c0_i32_0 : i32, i32, i32
  }
}

</mosaic_0001>

<llo_original>
// kernel: tpu_custom_call.1
$region0: #{tpu_custom_call.1}
  #allocation0 [shape = 'u32[]', space=smem, size = 0x4, offset = 0x4, fixed_abs, tag = 'smem constant byte address 0x4 - core index']
  #allocation1 [shape = 'u32[144,128]{1,0:T(1,128)}', space=vmem, size = 0x12000, scoped, tag = 'internal scratch']
  #allocation2 [shape = 'f32[1,1]{1,0:T(1,128)S(1)}', space=vmem, size = 0x200, scoped, tag = 'scoped memory for tpu_custom_call.1']
  %s0 = inlined_call_operand.hbm [shape: f32[16,32], index: 0, kind: input, shape index: {}]
  %s1 = inlined_call_operand.hbm [shape: bf16[32,256], index: 1, kind: input, shape index: {}]
  %s2 = inlined_call_operand.vmem [shape: f32[1,256], index: 2, kind: input, shape index: {}]
  %s3 = inlined_call_operand.hbm [shape: bf16[256,128], index: 3, kind: input, shape index: {}]
  %s4 = inlined_call_operand.vmem [shape: f32[1,128], index: 4, kind: input, shape index: {}]
  %s5 = inlined_call_operand.vmem [shape: f32[1,128], index: 5, kind: input, shape index: {}]
  %s6 = inlined_call_operand.<no memory space> [shape: f32[1,1], index: 6, kind: input, shape index: {}]
  %s7 = inlined_call_operand.hbm [shape: f32[1,1,16], index: 7, kind: output, shape index: {}]
  %s8 = sld [smem:[#allocation0]]
  $region50: #{tpu_custom_call.1} parent=0
    _
  %s10 = ssub.s32 1, %s8
  %s11 = scalar_select 0, %s10, %s8
  %v12 = vstv %s6
  %13 = vst [vmem:[#allocation2] sm:$0x1] %v12
  $region1: #{tpu_custom_call.1} parent=0
    #allocation3 [shape = 'u8[8192]{0}', space=vmem, size = 0x2000, scoped, tag = 'input window, operand 0, single buffered']
    #allocation4 [shape = 's32[1]{0}', space=sflag, size = 0x4, scoped, tag = 'scoped memory for tpu_custom_call.1']
    #allocation5 [shape = 's32[1]{0}', space=sflag, size = 0x4, scoped, tag = 'scoped memory for tpu_custom_call.1']
    #allocation6 [shape = 'u8[16384]{0}', space=vmem, size = 0x4000, scoped, tag = 'input window, operand 1, single buffered']
    #allocation7 [shape = 's32[1]{0}', space=sflag, size = 0x4, scoped, tag = 'scoped memory for tpu_custom_call.1']
    #allocation8 [shape = 'u8[65536]{0}', space=vmem, size = 0x10000, scoped, tag = 'input window, operand 3, single buffered']
    #allocation9 [shape = 'u8[512]{0}', space=vmem, size = 0x400, scoped, tag = 'output window, operand 0, single buffered']
    %14 = vsyncpa [#allocation4], 0
    %15 = vsyncpa [#allocation7], 0
    %16 = vsyncpa [#allocation5], 0
    // Predicated region
    $region2: #{tpu_custom_call.1} parent=1 // pred_check
      _
    $region3: #{tpu_custom_call.1} parent=1 // pred_check_branch
      %18 = sbr.rel (0) target = $region5
    $region4: #{tpu_custom_call.1} parent=1 // pred_region
      %s20 = ssub.s32 256, 256
      %21 = vsyncadd [#allocation4], %s20
      %s22 = sshll.u32 [#allocation3], 4
      %s23 = int_to_ptr.vmem [resolvable:$true] %s22
      %28 = dma.hbm_to_vmem [thread:$0]  %s0, 256, %s23, [#allocation4], 128, 128, 8
    $region5: #{tpu_custom_call.1} parent=1 // pred_fallthru
      _
    // Predicated region
    $region6: #{tpu_custom_call.1} parent=1 // pred_check
      _
    $region7: #{tpu_custom_call.1} parent=1 // pred_check_branch
      %30 = sbr.rel (0) target = $region9
    $region8: #{tpu_custom_call.1} parent=1 // pred_region
      %s32 = ssub.s32 512, 512
      %33 = vsyncadd [#allocation7], %s32
      %s34 = sshll.u32 [#allocation6], 4
      %s35 = int_to_ptr.vmem [resolvable:$true] %s34
      %40 = dma.hbm_to_vmem [thread:$0]  %s1, 512, %s35, [#allocation7], 128, 128, 8
    $region9: #{tpu_custom_call.1} parent=1 // pred_fallthru
      _
    // Predicated region
    $region10: #{tpu_custom_call.1} parent=1 // pred_check
      _
    $region11: #{tpu_custom_call.1} parent=1 // pred_check_branch
      %42 = sbr.rel (0) target = $region13
    $region12: #{tpu_custom_call.1} parent=1 // pred_region
      _
    $region13: #{tpu_custom_call.1} parent=1 // pred_fallthru
      _
    // Predicated region
    $region14: #{tpu_custom_call.1} parent=1 // pred_check
      _
    $region15: #{tpu_custom_call.1} parent=1 // pred_check_branch
      %44 = sbr.rel (0) target = $region17
    $region16: #{tpu_custom_call.1} parent=1 // pred_region
      %s46 = ssub.s32 2048, 2048
      %47 = vsyncadd [#allocation7], %s46
      %s48 = sshll.u32 [#allocation8], 4
      %s49 = int_to_ptr.vmem [resolvable:$true] %s48
      %54 = dma.hbm_to_vmem [thread:$0]  %s3, 2048, %s49, [#allocation7], 64, 64, 4
    $region17: #{tpu_custom_call.1} parent=1 // pred_fallthru
      _
    // Predicated region
    $region18: #{tpu_custom_call.1} parent=1 // pred_check
      _
    $region19: #{tpu_custom_call.1} parent=1 // pred_check_branch
      %56 = sbr.rel (0) target = $region21
    $region20: #{tpu_custom_call.1} parent=1 // pred_region
      _
    $region21: #{tpu_custom_call.1} parent=1 // pred_fallthru
      _
    // Predicated region
    $region22: #{tpu_custom_call.1} parent=1 // pred_check
      _
    $region23: #{tpu_custom_call.1} parent=1 // pred_check_branch
      %58 = sbr.rel (0) target = $region25
    $region24: #{tpu_custom_call.1} parent=1 // pred_region
      _
    $region25: #{tpu_custom_call.1} parent=1 // pred_fallthru
      _
    // Predicated region
    $region26: #{tpu_custom_call.1} parent=1 // pred_check
      _
    $region27: #{tpu_custom_call.1} parent=1 // pred_check_branch
      %60 = sbr.rel (0) target = $region29
    $region28: #{tpu_custom_call.1} parent=1 // pred_region
      _
    $region29: #{tpu_custom_call.1} parent=1 // pred_fallthru
      _
    // Predicated region
    $region30: #{tpu_custom_call.1} parent=1 // pred_check
      _
    $region31: #{tpu_custom_call.1} parent=1 // pred_check_branch
      %62 = sbr.rel (0) target = $region33
    $region32: #{tpu_custom_call.1} parent=1 // pred_region
      %63 = dma.done [#allocation4], 256
    $region33: #{tpu_custom_call.1} parent=1 // pred_fallthru
      _
    // Predicated region
    $region34: #{tpu_custom_call.1} parent=1 // pred_check
      _
    $region35: #{tpu_custom_call.1} parent=1 // pred_check_branch
      %65 = sbr.rel (0) target = $region37
    $region36: #{tpu_custom_call.1} parent=1 // pred_region
      %66 = dma.done [#allocation7], 512
    $region37: #{tpu_custom_call.1} parent=1 // pred_fallthru
      _
    // Predicated region
    $region38: #{tpu_custom_call.1} parent=1 // pred_check
      _
    $region39: #{tpu_custom_call.1} parent=1 // pred_check_branch
      %68 = sbr.rel (0) target = $region41
    $region40: #{tpu_custom_call.1} parent=1 // pred_region
      %69 = dma.done [#allocation7], 2048
    $region41: #{tpu_custom_call.1} parent=1 // pred_fallthru
      _
    %v71 = vld [vmem:[#allocation3] sm:$0xff]
    %v72 = vld [vmem:[#allocation3 + $0x8] sm:$0xff]
    %v73 = vpack.c.bf16 %v72, %v71
    %v74 = vld [vmem:[#allocation6] sm:$0xff]
    %v75 = vld [vmem:[#allocation6 + $0x8] sm:$0xff]
    %v76 = vld [vmem:[#allocation6 + $0x10] sm:$0xff]
    %v77 = vld [vmem:[#allocation6 + $0x18] sm:$0xff]
    %v78 = vld [vmem:[%s2] sm:$0x3]
    %v80 = vlaneseq
    %v81 = vshrl.u32 %v80, 7
    %v82 = vsub.s32 0, %v81
    %v83 = vrot.slane %v78, %v82
    %v84 = vlaneseq
    %v85 = vshrl.u32 %v84, 7
    %v86 = vsub.s32 1, %v85
    %v87 = vrot.slane %v78, %v86
    %v94 = vunpack.c.l.b16 %v74
    %v95 = vunpack.c.h.b16 %v74
    %v96 = vunpack.c.l.b16 %v75
    %v97 = vunpack.c.h.b16 %v75
    %v98 = vunpack.c.l.b16 %v76
    %v99 = vunpack.c.h.b16 %v76
    %v100 = vunpack.c.l.b16 %v77
    %v101 = vunpack.c.h.b16 %v77
    %v102 = vpack.c.b16 %v96, %v94
    %v103 = vpack.c.b16 %v97, %v95
    %v104 = vpack.c.b16 %v100, %v98
    %v105 = vpack.c.b16 %v101, %v99
    %vm110 = vcmask 261120
    %v112 = vsel %vm110, %v73, 0
    %114 = vmatprep.subr.bf16.mxu0 %v103
    %115 = vmatpush1.bf16.msra.mxu0 %v102
    %116 = vmatprep.subr.bf16.mxu0 %v105
    %117 = vmatpush1.bf16.msra.mxu0 %v104
    %118 = vmatprep.subr.bf16.mxu0 0
    %119 = vmatpush1.bf16.msra.mxu0 0
    %120 = vmatprep.subr.bf16.mxu0 0
    %121 = vmatpush1.bf16.msra.mxu0 0
    %122 = vmatprep.subr.bf16.mxu0 0
    %123 = vmatpush1.bf16.msra.mxu0 0
    %124 = vmatprep.subr.bf16.mxu0 0
    %125 = vmatpush1.bf16.msra.mxu0 0
    %126 = vmatprep.subr.bf16.mxu0 0
    %127 = vmatpush1.bf16.msra.mxu0 0
    %128 = vmatprep.subr.bf16.mxu0 0
    %129 = vmatpush1.bf16.msra.mxu0 0
    %130 = vmatprep.subr.bf16.mxu0 0
    %131 = vmatpush1.bf16.msra.mxu0 0
    %132 = vmatprep.subr.bf16.mxu0 0
    %133 = vmatpush1.bf16.msra.mxu0 0
    %134 = vmatprep.subr.bf16.mxu0 0
    %135 = vmatpush1.bf16.msra.mxu0 0
    %136 = vmatprep.subr.bf16.mxu0 0
    %137 = vmatpush1.bf16.msra.mxu0 0
    %138 = vmatprep.subr.bf16.mxu0 0
    %139 = vmatpush1.bf16.msra.mxu0 0
    %140 = vmatprep.subr.bf16.mxu0 0
    %141 = vmatpush1.bf16.msra.mxu0 0
    %142 = vmatprep.subr.bf16.mxu0 0
    %143 = vmatpush1.bf16.msra.mxu0 0
    %144 = vmatprep.subr.bf16.mxu0 0
    %145 = vmatpush1.bf16.msra.mxu0 0
    %146 = vmatprep.mubr.bf16.mxu0 0
    %147 = vmatmul.mubr.bf16.gmra.mrb[0].mxu0 %v112
    %v148 = vpop.f32.mrb[0].mxu0
    %v149 = vadd.f32 %v83, %v148
    %v150 = vpop.f32.mrb[0].mxu0
    %v151 = vadd.f32 %v87, %v150
    %v152 = vpop.f32.mrb[0].mxu0
    %v153 = vadd.f32 %v83, %v152
    %v154 = vpop.f32.mrb[0].mxu0
    %v155 = vadd.f32 %v87, %v154
    %156 = vdwg.mxu0
    %v157 = vmax.f32 %v149, 0.0
    %v158 = vmax.f32 %v151, 0.0
    %v159 = vmax.f32 %v153, 0.0
    %v160 = vmax.f32 %v155, 0.0
    %v161 = vpack.c.bf16 %v159, %v157
    %v162 = vpack.c.bf16 %v160, %v158
    %v163 = vld [vmem:[#allocation8] sm:$0xf]
    %v164 = vld [vmem:[#allocation8 + $0x4] sm:$0xf]
    %v165 = vld [vmem:[#allocation8 + $0x8] sm:$0xf]
    %v166 = vld [vmem:[#allocation8 + $0xc] sm:$0xf]
    %v167 = vld [vmem:[#allocation8 + $0x10] sm:$0xf]
    %v168 = vld [vmem:[#allocation8 + $0x14] sm:$0xf]
    %v169 = vld [vmem:[#allocation8 + $0x18] sm:$0xf]
    %v170 = vld [vmem:[#allocation8 + $0x1c] sm:$0xf]
    %v171 = vld [vmem:[#allocation8 + $0x20] sm:$0xf]
    %v172 = vld [vmem:[#allocation8 + $0x24] sm:$0xf]
    %v173 = vld [vmem:[#allocation8 + $0x28] sm:$0xf]
    %v174 = vld [vmem:[#allocation8 + $0x2c] sm:$0xf]
    %v175 = vld [vmem:[#allocation8 + $0x30] sm:$0xf]
    %v176 = vld [vmem:[#allocation8 + $0x34] sm:$0xf]
    %v177 = vld [vmem:[#allocation8 + $0x38] sm:$0xf]
    %v178 = vld [vmem:[#allocation8 + $0x3c] sm:$0xf]
    %v179 = vld [vmem:[#allocation8 + $0x40] sm:$0xf]
    %v180 = vld [vmem:[#allocation8 + $0x44] sm:$0xf]
    %v181 = vld [vmem:[#allocation8 + $0x48] sm:$0xf]
    %v182 = vld [vmem:[#allocation8 + $0x4c] sm:$0xf]
    %v183 = vld [vmem:[#allocation8 + $0x50] sm:$0xf]
    %v184 = vld [vmem:[#allocation8 + $0x54] sm:$0xf]
    %v185 = vld [vmem:[#allocation8 + $0x58] sm:$0xf]
    %v186 = vld [vmem:[#allocation8 + $0x5c] sm:$0xf]
    %v187 = vld [vmem:[#allocation8 + $0x60] sm:$0xf]
    %v188 = vld [vmem:[#allocation8 + $0x64] sm:$0xf]
    %v189 = vld [vmem:[#allocation8 + $0x68] sm:$0xf]
    %v190 = vld [vmem:[#allocation8 + $0x6c] sm:$0xf]
    %v191 = vld [vmem:[#allocation8 + $0x70] sm:$0xf]
    %v192 = vld [vmem:[#allocation8 + $0x74] sm:$0xf]
    %v193 = vld [vmem:[#allocation8 + $0x78] sm:$0xf]
    %v194 = vld [vmem:[#allocation8 + $0x7c] sm:$0xf]
    %v195 = vld [vmem:[%s4] sm:$0x1]
    %v197 = vlaneseq
    %v198 = vshrl.u32 %v197, 7
    %v199 = vsub.s32 0, %v198
    %v200 = vrot.slane %v195, %v199
    %v234 = vunpack.c.l.b16 %v163
    %v235 = vunpack.c.l.b16 %v164
    %v236 = vunpack.c.l.b16 %v165
    %v237 = vunpack.c.l.b16 %v166
    %v238 = vunpack.c.l.b16 %v167
    %v239 = vunpack.c.l.b16 %v168
    %v240 = vunpack.c.l.b16 %v169
    %v241 = vunpack.c.l.b16 %v170
    %v242 = vunpack.c.l.b16 %v171
    %v243 = vunpack.c.l.b16 %v172
    %v244 = vunpack.c.l.b16 %v173
    %v245 = vunpack.c.l.b16 %v174
    %v246 = vunpack.c.l.b16 %v175
    %v247 = vunpack.c.l.b16 %v176
    %v248 = vunpack.c.l.b16 %v177
    %v249 = vunpack.c.l.b16 %v178
    %v250 = vunpack.c.l.b16 %v179
    %v251 = vunpack.c.l.b16 %v180
    %v252 = vunpack.c.l.b16 %v181
    %v253 = vunpack.c.l.b16 %v182
    %v254 = vunpack.c.l.b16 %v183
    %v255 = vunpack.c.l.b16 %v184
    %v256 = vunpack.c.l.b16 %v185
    %v257 = vunpack.c.l.b16 %v186
    %v258 = vunpack.c.l.b16 %v187
    %v259 = vunpack.c.l.b16 %v188
    %v260 = vunpack.c.l.b16 %v189
    %v261 = vunpack.c.l.b16 %v190
    %v262 = vunpack.c.l.b16 %v191
    %v263 = vunpack.c.l.b16 %v192
    %v264 = vunpack.c.l.b16 %v193
    %v265 = vunpack.c.l.b16 %v194
    %v266 = vpack.c.b16 %v235, %v234
    %v267 = vpack.c.b16 %v237, %v236
    %v268 = vpack.c.b16 %v239, %v238
    %v269 = vpack.c.b16 %v241, %v240
    %v270 = vpack.c.b16 %v243, %v242
    %v271 = vpack.c.b16 %v245, %v244
    %v272 = vpack.c.b16 %v247, %v246
    %v273 = vpack.c.b16 %v249, %v248
    %v274 = vpack.c.b16 %v251, %v250
    %v275 = vpack.c.b16 %v253, %v252
    %v276 = vpack.c.b16 %v255, %v254
    %v277 = vpack.c.b16 %v257, %v256
    %v278 = vpack.c.b16 %v259, %v258
    %v279 = vpack.c.b16 %v261, %v260
    %v280 = vpack.c.b16 %v263, %v262
    %v281 = vpack.c.b16 %v265, %v264
    %298 = vmatprep.subr.bf16.mxu0 0
    %299 = vmatpush1.bf16.msra.mxu0 %v266
    %300 = vmatprep.subr.bf16.mxu0 0
    %301 = vmatpush1.bf16.msra.mxu0 %v267
    %302 = vmatprep.subr.bf16.mxu0 0
    %303 = vmatpush1.bf16.msra.mxu0 %v268
    %304 = vmatprep.subr.bf16.mxu0 0
    %305 = vmatpush1.bf16.msra.mxu0 %v269
    %306 = vmatprep.subr.bf16.mxu0 0
    %307 = vmatpush1.bf16.msra.mxu0 %v270
    %308 = vmatprep.subr.bf16.mxu0 0
    %309 = vmatpush1.bf16.msra.mxu0 %v271
    %310 = vmatprep.subr.bf16.mxu0 0
    %311 = vmatpush1.bf16.msra.mxu0 %v272
    %312 = vmatprep.subr.bf16.mxu0 0
    %313 = vmatpush1.bf16.msra.mxu0 %v273
    %314 = vmatprep.subr.bf16.mxu0 0
    %315 = vmatpush1.bf16.msra.mxu0 %v274
    %316 = vmatprep.subr.bf16.mxu0 0
    %317 = vmatpush1.bf16.msra.mxu0 %v275
    %318 = vmatprep.subr.bf16.mxu0 0
    %319 = vmatpush1.bf16.msra.mxu0 %v276
    %320 = vmatprep.subr.bf16.mxu0 0
    %321 = vmatpush1.bf16.msra.mxu0 %v277
    %322 = vmatprep.subr.bf16.mxu0 0
    %323 = vmatpush1.bf16.msra.mxu0 %v278
    %324 = vmatprep.subr.bf16.mxu0 0
    %325 = vmatpush1.bf16.msra.mxu0 %v279
    %326 = vmatprep.subr.bf16.mxu0 0
    %327 = vmatpush1.bf16.msra.mxu0 %v280
    %328 = vmatprep.subr.bf16.mxu0 0
    %329 = vmatpush1.bf16.msra.mxu0 %v281
    %330 = vmatprep.mubr.bf16.mxu0 %v162
    %331 = vmatmul.mubr.bf16.gmra.mrb[0].mxu0 %v161
    %v332 = vpop.f32.mrb[0].mxu0
    %v333 = vadd.f32 %v200, %v332
    %v334 = vpop.f32.mrb[0].mxu0
    %v335 = vpop.f32.mrb[0].mxu0
    %v336 = vadd.f32 %v200, %v335
    %v337 = vpop.f32.mrb[0].mxu0
    %338 = vdwg.mxu0
    %v339 = vmax.f32 %v333, 0.0
    %v340 = vmax.f32 %v336, 0.0
    %v341 = vld [vmem:[%s5] sm:$0x1]
    %v343 = vlaneseq
    %v344 = vshrl.u32 %v343, 7
    %v345 = vsub.s32 0, %v344
    %v346 = vrot.slane %v341, %v345
    %v348 = vmul.f32 %v339, %v346
    %v349 = vmul.f32 %v340, %v346
    %350 = vadd.xlane.f32.xlu0 %v348
    %v351 = vpop.xlane.xlu0 %350
    %352 = vadd.xlane.f32.xlu0 %v349
    %v353 = vpop.xlane.xlu0 %352
    %v354 = vld [vmem:[#allocation2] sm:$0x1]
    %v356 = vlaneseq
    %v357 = vshrl.u32 %v356, 7
    %v358 = vsub.s32 0, %v357
    %v359 = vrot.slane %v354, %v358
    %v361 = vadd.f32 %v351, %v359
    %v362 = vadd.f32 %v353, %v359
    %v363 = vxor.u32 %v361, 2147483648
    %v364 = vxor.u32 %v362, 2147483648
    %v365 = vmul.f32 %v363, 1.442695
    %v366 = vpow.pop %v365
    %v367 = vmul.f32 %v364, 1.442695
    %v368 = vpow.pop %v367
    %v369 = vadd.f32 %v366, 1.0
    %v370 = vadd.f32 %v368, 1.0
    %v371 = vrcp.pop %v369
    %v372 = vmul.f32 1.0, %v371
    %v373 = vrcp.pop %v370
    %v374 = vmul.f32 1.0, %v373
    %377 = vset.pattern.permute.xlu0 0
    %378 = vperm.xlu0 %377, %v372
    %v379 = vpop.permute.xlu0 %378
    %380 = vset.pattern.permute.xlu0 0
    %381 = vperm.xlu0 %380, %v374
    %v382 = vpop.permute.xlu0 %381
    %v383 = vlaneseq
    %v384 = vand.u32 %v383, 127
    %v385 = vlaneseq
    %v386 = vshrl.u32 %v385, 7
    %v387 = vsub.s32 %v384, %v386
    %v388 = vrot.slane %v379, %v387
    %v389 = vadd.s32 %v384, 4294967288
    %v390 = vlaneseq
    %v391 = vshrl.u32 %v390, 7
    %v392 = vsub.s32 %v389, %v391
    %v393 = vrot.slane %v382, %v392
    %vm394 = vcmask 130112
    %v395 = vsel %vm394, %v393, %v388
    %vm397 = vcmask 122880
    %398 = vst.msk [vmem:[#allocation9] sm:$0x1] %vm397, %v395
    // Predicated region
    $region42: #{tpu_custom_call.1} parent=1 // pred_check
      _
    $region43: #{tpu_custom_call.1} parent=1 // pred_check_branch
      %400 = sbr.rel (0) target = $region45
    $region44: #{tpu_custom_call.1} parent=1 // pred_region
      %s402 = ssub.s32 16, 16
      %403 = vsyncadd [#allocation5], %s402
      %s405 = sshll.u32 [#allocation9], 4
      %s406 = int_to_ptr.vmem [resolvable:$true] %s405
      %408 = dma.vmem_to_hbm [thread:$0]  %s406, 16, %s7, [#allocation5]
    $region45: #{tpu_custom_call.1} parent=1 // pred_fallthru
      _
    // Predicated region
    $region46: #{tpu_custom_call.1} parent=1 // pred_check
      _
    $region47: #{tpu_custom_call.1} parent=1 // pred_check_branch
      %410 = sbr.rel (0) target = $region49
    $region48: #{tpu_custom_call.1} parent=1 // pred_region
      %411 = dma.done [#allocation5], 16
    $region49: #{tpu_custom_call.1} parent=1 // pred_fallthru
      _
    %412 = vsyncpa [#allocation4], 1
    %413 = vsyncpa [#allocation7], 1
    %414 = vsyncpa [#allocation5], 1

</llo_original>
